<compile_context>
chip_gen: v7x
topology: tpu7x:2x2x1
jax: 0.10.0
libtpu: 0.0.40
codegen_flags: <defaults>
</compile_context>

<pallas_src>
import math

import jax
import jax.numpy as jnp
from jax.experimental import pallas as pl
from jax.experimental.pallas import tpu as pltpu


# ~2 MiB per block: with double-buffered input + output that is ~8 MiB of VMEM,
# safe under every generation's scoped-VMEM default (16/32/32 MiB).
_TARGET_BLOCK_BYTES = 2 * 1024 * 1024


def _copy_kernel(x_ref, o_ref):
    # Lane-dense block copy (whole tile at once).
    o_ref[...] = x_ref[...]


def _pick_lane_width(total):
    """Largest capped lane width (multiple of 128) that exactly divides total."""
    for cand in (8192, 4096, 2048, 1024, 512, 256, 128):
        if total % cand == 0:
            return cand
    return None


def _materializing_copy_2d(x2):
    """Tiled (rows, lanes) copy through VMEM, row-tiled to ~2 MiB blocks."""
    rows, lanes = x2.shape
    itemsize = jnp.dtype(x2.dtype).itemsize

    # Rows per block: cap block bytes; second-to-last block dim must be a
    # multiple of 8 sublanes or equal the full row extent.
    tr = max(_TARGET_BLOCK_BYTES // max(lanes * itemsize, 1), 1)
    if tr >= rows:
        tr = rows
    else:
        tr = max((tr // 8) * 8, 8)

    grid_rows = pl.cdiv(rows, tr)

    return pl.pallas_call(
        _copy_kernel,
        out_shape=jax.ShapeDtypeStruct((rows, lanes), x2.dtype),
        grid=(grid_rows,),
        in_specs=[pl.BlockSpec((tr, lanes), lambda i: (i, 0))],
        out_specs=pl.BlockSpec((tr, lanes), lambda i: (i, 0)),
        compiler_params=pltpu.CompilerParams(
            dimension_semantics=("parallel",),
            vmem_limit_bytes=32 * 1024 * 1024,
        ),
    )(x2)


def flatten_forward(x, dim=1):
    """Pallas equivalent of Flatten(dim).forward(x): x.view(*x.shape[:dim], -1)."""
    lead = x.shape[:dim]
    flat = math.prod(x.shape[dim:]) if x.shape[dim:] else 1
    total = math.prod(x.shape) if x.shape else 1

    # Since this is a pure copy, re-factorize the element count into a
    # lane-dense (rows, L) layout (L a large multiple of 128) whenever possible
    # -> unmasked full-lane stores regardless of whether C*H*W is 128-aligned.
    lanes = _pick_lane_width(total)
    if lanes is not None:
        x2 = x.reshape(total // lanes, lanes)
    else:
        # Fallback: (leading, flat) layout; the lane dim equals the full array
        # extent so the BlockSpec stays legal (masked edge stores, perf-only).
        # TODO(synk): a non-128-aligned `flat` larger than the block budget
        # would need a padded-copy path; not needed for the spec shapes.
        rows = math.prod(lead) if lead else 1
        x2 = x.reshape(rows, flat)

    out2 = _materializing_copy_2d(x2)

    # Metadata-only reshapes on either side of the kernel (pure index glue).
    return out2.reshape(*lead, flat)


if __name__ == "__main__":
    key = jax.random.PRNGKey(0)
    # Small shapes consistent with the module: batch=2, channels=4, spatial=16.
    x = jax.random.normal(key, (2, 4, 16, 16), jnp.float32)

    fwd = jax.jit(flatten_forward)
    y = fwd(x)
    jax.block_until_ready(y)

    # Reference: PyTorch x.view(x.shape[0], -1)
    ref = x.reshape(2, -1)
    assert y.shape == (2, 4 * 16 * 16)
    assert y.dtype == x.dtype
    assert jnp.array_equal(y, ref)

    print("KERNEL_OK")
</pallas_src>

<mosaic_0001>
module attributes {stable_mosaic.version = 11 : i64} {
  func.func @_copy_kernel(%arg0: i32, %arg1: memref<1x2048xf32, #tpu.memory_space<vmem>>, %arg2: memref<1x2048xf32, #tpu.memory_space<vmem>>) attributes {dimension_semantics = [#tpu.dimension_semantics<parallel>], iteration_bounds = array<i64: 1>, scalar_prefetch = 0 : i64, scratch_operands = 0 : i64, tpu.core_type = #tpu.core_type<tc>, window_params = [{transform_indices = @transform_0, window_bounds = array<i64: 1, 2048>}, {transform_indices = @transform_1, window_bounds = array<i64: 1, 2048>}]} {
    %c0 = arith.constant 0 : index
    %c0_0 = arith.constant 0 : index
    %0 = vector.load %arg1[%c0, %c0_0] : memref<1x2048xf32, #tpu.memory_space<vmem>>, vector<1x2048xf32>
    %c0_1 = arith.constant 0 : index
    %c0_2 = arith.constant 0 : index
    %1 = vector.load %arg2[%c0_1, %c0_2] : memref<1x2048xf32, #tpu.memory_space<vmem>>, vector<1x2048xf32>
    tpu.vector_store %arg2[%c0_1, %c0_2], %0 {strides = array<i32>} : memref<1x2048xf32, #tpu.memory_space<vmem>>, vector<1x2048xf32>,
    return
  }
  func.func @transform_0(%arg0: i32) -> (i32, i32) {
    %c0_i32 = arith.constant 0 : i32
    %c0_i32_0 = arith.constant 0 : i32
    return %arg0, %c0_i32 : i32, i32
  }
  func.func @transform_1(%arg0: i32) -> (i32, i32) {
    %c0_i32 = arith.constant 0 : i32
    %c0_i32_0 = arith.constant 0 : i32
    return %arg0, %c0_i32 : i32, i32
  }
}

</mosaic_0001>

<llo_original>
// kernel: flatten_forward.1
$region0: #{flatten_forward.1}
  #allocation0 [shape = 'u32[]', space=smem, size = 0x4, offset = 0x4, fixed_abs, tag = 'smem constant byte address 0x4 - core index']
  #allocation1 [shape = 'u32[144,128]{1,0:T(1,128)}', space=vmem, size = 0x12000, scoped, tag = 'internal scratch']
  %s0 = inlined_call_operand.vmem [shape: f32[1,2048], index: 0, kind: input, shape index: {}]
  %s1 = inlined_call_operand.vmem [shape: f32[1,2048], index: 1, kind: output, shape index: {}]
  %s2 = sld [smem:[#allocation0]]
  $region14: #{flatten_forward.1} parent=0
    _
  %s4 = ssub.s32 1, %s2
  %s5 = scalar_select 0, %s4, %s2
  // Predicated region
  $region2: #{flatten_forward.1} parent=0 // pred_check
    _
  $region3: #{flatten_forward.1} parent=0 // pred_check_branch
    %7 = sbr.rel (0) target = $region5
  $region4: #{flatten_forward.1} parent=0 // pred_region
    _
  $region5: #{flatten_forward.1} parent=0 // pred_fallthru
    _
  %v8 = vld [vmem:[%s0] sm:$0xff]
  %v9 = vld [vmem:[%s0 + $0x8] sm:$0xff]
  %10 = vst [vmem:[%s1] sm:$0xff] %v8
  %11 = vst [vmem:[%s1 + $0x8] sm:$0xff] %v9
  // Predicated region
  $region6: #{flatten_forward.1} parent=0 // pred_check
    _
  $region7: #{flatten_forward.1} parent=0 // pred_check_branch
    %13 = sbr.rel (0) target = $region9
  $region8: #{flatten_forward.1} parent=0 // pred_region
    _
  $region9: #{flatten_forward.1} parent=0 // pred_fallthru
    _
  // Predicated region
  $region10: #{flatten_forward.1} parent=0 // pred_check
    _
  $region11: #{flatten_forward.1} parent=0 // pred_check_branch
    %15 = sbr.rel (0) target = $region13
  $region12: #{flatten_forward.1} parent=0 // pred_region
    _
  $region13: #{flatten_forward.1} parent=0 // pred_fallthru
    _

</llo_original>
